<compile_context>
chip_gen: v7x
topology: tpu7x:2x2x1
jax: 0.10.0
libtpu: 0.0.40
codegen_flags: <defaults>
</compile_context>

<pallas_src>
import functools

import jax
import jax.numpy as jnp
from jax.experimental import pallas as pl
from jax.experimental.pallas import tpu as pltpu


def generate_filter(start, end, size):
    # identical semantics to the PyTorch helper
    return [[0.0 if (i + j > end or i + j <= start) else 1.0 for j in range(size)]
            for i in range(size)]


def _filter_kernel(base_ref, learn_ref, x_ref, o_ref, *, scale):
    # base_ref, learn_ref: (1, Lp) f32    x_ref, o_ref: (tr, Lp) x.dtype
    # norm_sigma(learnable) = 2*sigmoid(l) - 1; the 1/ft_num norm is folded
    # into the tiny filter row instead of dividing every element of x.
    filt = base_ref[...] + (2.0 * jax.nn.sigmoid(learn_ref[...]) - 1.0)
    if scale != 1.0:
        filt = filt * scale
    o_ref[...] = (x_ref[...] * filt).astype(o_ref.dtype)  # (1,Lp)->(tr,Lp) broadcast


def _round_up(v, m):
    return ((v + m - 1) // m) * m


def _choose_row_tile(num_rows, num_lanes, itemsize, *, budget_bytes=4 << 20, min_grid=2):
    """Fixed row tile (multiple of 8); grid = cdiv handles any ragged tail.

    - ~budget_bytes per tile keeps double-buffered in+out tiles well inside
      scoped VMEM on every generation while amortizing the ~0.35 us grid-step
      overhead against HBM streaming.
    - When possible, cap the tile so there are >= min_grid steps so that
      "parallel" grid sharding can use both v7x TensorCores.
    """
    if num_rows < 8:
        return num_rows  # block first dim == full array dim (allowed)
    bytes_per_row = max(1, num_lanes * itemsize)
    tr = max(8, ((budget_bytes // bytes_per_row) // 8) * 8)
    if num_rows >= min_grid * 8:
        cap = max(8, (pl.cdiv(num_rows, min_grid) // 8) * 8)
        tr = min(tr, cap)
    # Never exceed the (floor-to-8) row count; the remainder is a ragged tail.
    return min(tr, max(8, (num_rows // 8) * 8))


def filter_forward(x, base, learnable, *, norm=False, ft_num=1.0):
    B, C, H, W = x.shape
    assert base.shape == (H, W) and learnable.shape == (H, W)

    R = B * C
    L = H * W
    Lp = _round_up(L, 128)  # keep the output last dim lane-dense (unmasked vst)

    x2 = x.reshape(R, L)
    base2 = base.astype(jnp.float32).reshape(1, L)
    learn2 = learnable.astype(jnp.float32).reshape(1, L)
    if Lp != L:
        x2 = jnp.pad(x2, ((0, 0), (0, Lp - L)))
        base2 = jnp.pad(base2, ((0, 0), (0, Lp - L)))
        learn2 = jnp.pad(learn2, ((0, 0), (0, Lp - L)))

    scale = (1.0 / float(ft_num)) if norm else 1.0
    kernel = functools.partial(_filter_kernel, scale=scale)

    itemsize = jnp.dtype(x.dtype).itemsize
    tr = _choose_row_tile(R, Lp, itemsize)
    grid = (pl.cdiv(R, tr),)

    # Explicit VMEM accounting: double-buffered x tile + out tile + filter rows.
    tile_bytes = tr * Lp * itemsize
    filt_bytes = Lp * 4
    needed = 2 * tile_bytes + 2 * tile_bytes + 2 * 2 * filt_bytes + (4 << 20)
    vmem_limit = int(min(48 << 20, max(32 << 20, needed)))

    y2 = pl.pallas_call(
        kernel,
        out_shape=jax.ShapeDtypeStruct((R, Lp), x.dtype),
        grid_spec=pltpu.PrefetchScalarGridSpec(
            num_scalar_prefetch=0,
            grid=grid,
            in_specs=[
                pl.BlockSpec((1, Lp), lambda r: (0, 0)),    # base (tiny, constant)
                pl.BlockSpec((1, Lp), lambda r: (0, 0)),    # learnable (tiny, constant)
                pl.BlockSpec((tr, Lp), lambda r: (r, 0)),   # x row tile
            ],
            out_specs=pl.BlockSpec((tr, Lp), lambda r: (r, 0)),
        ),
        compiler_params=pltpu.CompilerParams(
            dimension_semantics=("parallel",),   # shard row tiles across TCs (v7x)
            vmem_limit_bytes=vmem_limit,
        ),
    )(base2, learn2, x2)

    if Lp != L:
        y2 = y2[:, :L]
    return y2.reshape(B, C, H, W)


if __name__ == "__main__":
    # Module config (small, consistent with F3Net usage on DCT blocks)
    size = 16
    band_start = 0
    band_end = size // 2
    norm = True

    key = jax.random.PRNGKey(0)
    k_x, k_learn, k_x2 = jax.random.split(key, 3)

    # Parameters (deterministic, init like the module's __init__)
    base = jnp.asarray(generate_filter(band_start, band_end, size),
                       dtype=jnp.float32)                       # fixed band mask
    learnable = 0.1 * jax.random.normal(k_learn, (size, size),
                                        dtype=jnp.float32)      # N(0, 0.1)
    ft_num = float(jnp.sum(base))                               # scalar buffer

    def reference(xin):
        filt_ref = base + (2.0 * jax.nn.sigmoid(learnable) - 1.0)
        y_ref = xin.astype(jnp.float32) * filt_ref
        if norm:
            y_ref = y_ref / ft_num
        return y_ref.astype(xin.dtype)

    # 1) Canonical small shape, f32
    x = jax.random.normal(k_x, (2, 4, size, size), dtype=jnp.float32)
    y = jax.block_until_ready(
        filter_forward(x, base, learnable, norm=norm, ft_num=ft_num))
    assert jnp.allclose(y, reference(x), atol=1e-5, rtol=1e-5), "f32 mismatch"

    # 2) Awkward B*C (exercises cdiv grid + ragged tail) on the bf16 path
    xb = jax.random.normal(k_x2, (3, 5, size, size)).astype(jnp.bfloat16)
    yb = jax.block_until_ready(
        filter_forward(xb, base, learnable, norm=norm, ft_num=ft_num))
    assert jnp.allclose(yb.astype(jnp.float32),
                        reference(xb).astype(jnp.float32),
                        atol=2e-2, rtol=2e-2), "bf16 mismatch"

    print("KERNEL_OK")
</pallas_src>

<mosaic_0001>
module attributes {stable_mosaic.version = 11 : i64} {
  func.func @_filter_kernel(%arg0: i32, %arg1: memref<1x256xf32, #tpu.memory_space<vmem>>, %arg2: memref<1x256xf32, #tpu.memory_space<vmem>>, %arg3: memref<8x256xf32, #tpu.memory_space<vmem>>, %arg4: memref<8x256xf32, #tpu.memory_space<vmem>>) attributes {dimension_semantics = [#tpu.dimension_semantics<parallel>], iteration_bounds = array<i64: 1>, scalar_prefetch = 0 : i64, scratch_operands = 0 : i64, tpu.core_type = #tpu.core_type<tc>, window_params = [{pipeline_mode = #tpu.pipeline_mode<synchronous>, transform_indices = @transform_0, window_bounds = array<i64: 1, 256>}, {pipeline_mode = #tpu.pipeline_mode<synchronous>, transform_indices = @transform_1, window_bounds = array<i64: 1, 256>}, {transform_indices = @transform_2, window_bounds = array<i64: 8, 256>}, {transform_indices = @transform_3, window_bounds = array<i64: 8, 256>}]} {
    %c0 = arith.constant 0 : index
    %c0_0 = arith.constant 0 : index
    %0 = vector.load %arg1[%c0, %c0_0] : memref<1x256xf32, #tpu.memory_space<vmem>>, vector<1x256xf32>
    %c0_1 = arith.constant 0 : index
    %c0_2 = arith.constant 0 : index
    %1 = vector.load %arg2[%c0_1, %c0_2] : memref<1x256xf32, #tpu.memory_space<vmem>>, vector<1x256xf32>
    %2 = arith.negf %1 : vector<1x256xf32>
    %3 = math.exp %2 : vector<1x256xf32>
    %cst = arith.constant 1.000000e+00 : f32
    %4 = vector.broadcast %cst : f32 to vector<1x256xf32>
    %5 = arith.addf %4, %3 : vector<1x256xf32>
    %6 = arith.divf %4, %5 : vector<1x256xf32>
    %cst_3 = arith.constant 2.000000e+00 : f32
    %7 = vector.broadcast %cst_3 : f32 to vector<1x256xf32>
    %8 = arith.mulf %7, %6 : vector<1x256xf32>
    %cst_4 = arith.constant 1.000000e+00 : f32
    %9 = vector.broadcast %cst_4 : f32 to vector<1x256xf32>
    %10 = arith.subf %8, %9 : vector<1x256xf32>
    %11 = arith.addf %0, %10 : vector<1x256xf32>
    %cst_5 = arith.constant 0.0227272734 : f32
    %12 = vector.broadcast %cst_5 : f32 to vector<1x256xf32>
    %13 = arith.mulf %11, %12 : vector<1x256xf32>
    %c0_6 = arith.constant 0 : index
    %c0_7 = arith.constant 0 : index
    %14 = vector.load %arg3[%c0_6, %c0_7] : memref<8x256xf32, #tpu.memory_space<vmem>>, vector<8x256xf32>
    %15 = vector.broadcast %13 : vector<1x256xf32> to vector<8x256xf32>
    %16 = arith.mulf %14, %15 : vector<8x256xf32>
    %c0_8 = arith.constant 0 : index
    %c0_9 = arith.constant 0 : index
    %17 = vector.load %arg4[%c0_8, %c0_9] : memref<8x256xf32, #tpu.memory_space<vmem>>, vector<8x256xf32>
    tpu.vector_store %arg4[%c0_8, %c0_9], %16 {strides = array<i32>} : memref<8x256xf32, #tpu.memory_space<vmem>>, vector<8x256xf32>,
    return
  }
  func.func @transform_0(%arg0: i32) -> (i32, i32) {
    %c0_i32 = arith.constant 0 : i32
    %c0_i32_0 = arith.constant 0 : i32
    %c0_i32_1 = arith.constant 0 : i32
    return %c0_i32, %c0_i32_0 : i32, i32
  }
  func.func @transform_1(%arg0: i32) -> (i32, i32) {
    %c0_i32 = arith.constant 0 : i32
    %c0_i32_0 = arith.constant 0 : i32
    %c0_i32_1 = arith.constant 0 : i32
    return %c0_i32, %c0_i32_0 : i32, i32
  }
  func.func @transform_2(%arg0: i32) -> (i32, i32) {
    %c0_i32 = arith.constant 0 : i32
    %c0_i32_0 = arith.constant 0 : i32
    return %arg0, %c0_i32 : i32, i32
  }
  func.func @transform_3(%arg0: i32) -> (i32, i32) {
    %c0_i32 = arith.constant 0 : i32
    %c0_i32_0 = arith.constant 0 : i32
    return %arg0, %c0_i32 : i32, i32
  }
}

</mosaic_0001>

<llo_original>
// kernel: tpu_custom_call.1
$region0: #{tpu_custom_call.1}
  #allocation0 [shape = 'u32[]', space=smem, size = 0x4, offset = 0x4, fixed_abs, tag = 'smem constant byte address 0x4 - core index']
  #allocation1 [shape = 'u32[144,128]{1,0:T(1,128)}', space=vmem, size = 0x12000, scoped, tag = 'internal scratch']
  %s0 = inlined_call_operand.hbm [shape: f32[1,256], index: 0, kind: input, shape index: {}]
  %s1 = inlined_call_operand.vmem [shape: f32[1,256], index: 1, kind: input, shape index: {}]
  %s2 = inlined_call_operand.hbm [shape: f32[8,256], index: 2, kind: input, shape index: {}]
  %s3 = inlined_call_operand.hbm [shape: f32[8,256], index: 3, kind: output, shape index: {}]
  %s4 = sld [smem:[#allocation0]]
  $region30: #{tpu_custom_call.1} parent=0
    _
  %s6 = ssub.s32 1, %s4
  %s7 = scalar_select 0, %s6, %s4
  $region1: #{tpu_custom_call.1} parent=0
    #allocation2 [shape = 'u8[1024]{0}', space=vmem, size = 0x400, scoped, tag = 'input window, operand 0, single buffered']
    #allocation3 [shape = 's32[1]{0}', space=sflag, size = 0x4, scoped, tag = 'scoped memory for tpu_custom_call.1']
    #allocation4 [shape = 's32[1]{0}', space=sflag, size = 0x4, scoped, tag = 'scoped memory for tpu_custom_call.1']
    #allocation5 [shape = 'u8[8192]{0}', space=vmem, size = 0x2000, scoped, tag = 'input window, operand 2, single buffered']
    #allocation6 [shape = 's32[1]{0}', space=sflag, size = 0x4, scoped, tag = 'scoped memory for tpu_custom_call.1']
    #allocation7 [shape = 'u8[8192]{0}', space=vmem, size = 0x2000, scoped, tag = 'output window, operand 0, single buffered']
    %8 = vsyncpa [#allocation3], 0
    %9 = vsyncpa [#allocation6], 0
    %10 = vsyncpa [#allocation4], 0
    // Predicated region
    $region2: #{tpu_custom_call.1} parent=1 // pred_check
      _
    $region3: #{tpu_custom_call.1} parent=1 // pred_check_branch
      %12 = sbr.rel (0) target = $region5
    $region4: #{tpu_custom_call.1} parent=1 // pred_region
      %s14 = ssub.s32 32, 32
      %15 = vsyncadd [#allocation3], %s14
      %s17 = sshll.u32 [#allocation2], 4
      %s18 = int_to_ptr.vmem [resolvable:$true] %s17
      %20 = dma.hbm_to_vmem [thread:$0]  %s0, 32, %s18, [#allocation3]
    $region5: #{tpu_custom_call.1} parent=1 // pred_fallthru
      _
    // Predicated region
    $region6: #{tpu_custom_call.1} parent=1 // pred_check
      _
    $region7: #{tpu_custom_call.1} parent=1 // pred_check_branch
      %22 = sbr.rel (0) target = $region9
    $region8: #{tpu_custom_call.1} parent=1 // pred_region
      _
    $region9: #{tpu_custom_call.1} parent=1 // pred_fallthru
      _
    // Predicated region
    $region10: #{tpu_custom_call.1} parent=1 // pred_check
      _
    $region11: #{tpu_custom_call.1} parent=1 // pred_check_branch
      %24 = sbr.rel (0) target = $region13
    $region12: #{tpu_custom_call.1} parent=1 // pred_region
      %s26 = ssub.s32 256, 256
      %27 = vsyncadd [#allocation6], %s26
      %s29 = sshll.u32 [#allocation5], 4
      %s30 = int_to_ptr.vmem [resolvable:$true] %s29
      %32 = dma.hbm_to_vmem [thread:$0]  %s2, 256, %s30, [#allocation6]
    $region13: #{tpu_custom_call.1} parent=1 // pred_fallthru
      _
    // Predicated region
    $region14: #{tpu_custom_call.1} parent=1 // pred_check
      _
    $region15: #{tpu_custom_call.1} parent=1 // pred_check_branch
      %34 = sbr.rel (0) target = $region17
    $region16: #{tpu_custom_call.1} parent=1 // pred_region
      %35 = dma.done [#allocation3], 32
    $region17: #{tpu_custom_call.1} parent=1 // pred_fallthru
      _
    // Predicated region
    $region18: #{tpu_custom_call.1} parent=1 // pred_check
      _
    $region19: #{tpu_custom_call.1} parent=1 // pred_check_branch
      %37 = sbr.rel (0) target = $region21
    $region20: #{tpu_custom_call.1} parent=1 // pred_region
      %38 = dma.done [#allocation6], 256
    $region21: #{tpu_custom_call.1} parent=1 // pred_fallthru
      _
    %v39 = vld [vmem:[#allocation2] sm:$0x3]
    %v40 = vld [vmem:[%s1] sm:$0x3]
    %v41 = vxor.u32 %v40, 2147483648
    %v42 = vmul.f32 %v41, 1.442695
    %v43 = vpow.pop %v42
    %v44 = vadd.f32 %v43, 1.0
    %v45 = vrcp.pop %v44
    %v46 = vmul.f32 1.0, %v45
    %v47 = vmul.f32 %v46, 2.0
    %v48 = vsub.f32 %v47, 1.0
    %v49 = vadd.f32 %v39, %v48
    %v50 = vmul.f32 %v49, 0.022727273
    %v51 = vld [vmem:[#allocation5] sm:$0xff]
    %v52 = vld [vmem:[#allocation5 + $0x8] sm:$0xff]
    %v54 = vlaneseq
    %v55 = vshrl.u32 %v54, 7
    %v56 = vsub.s32 0, %v55
    %v57 = vrot.slane %v50, %v56
    %v58 = vlaneseq
    %v59 = vshrl.u32 %v58, 7
    %v60 = vsub.s32 1, %v59
    %v61 = vrot.slane %v50, %v60
    %v64 = vmul.f32 %v51, %v57
    %v65 = vmul.f32 %v52, %v61
    %66 = vst [vmem:[#allocation7] sm:$0xff] %v64
    %67 = vst [vmem:[#allocation7 + $0x8] sm:$0xff] %v65
    // Predicated region
    $region22: #{tpu_custom_call.1} parent=1 // pred_check
      _
    $region23: #{tpu_custom_call.1} parent=1 // pred_check_branch
      %69 = sbr.rel (0) target = $region25
    $region24: #{tpu_custom_call.1} parent=1 // pred_region
      %s71 = ssub.s32 256, 256
      %72 = vsyncadd [#allocation4], %s71
      %s74 = sshll.u32 [#allocation7], 4
      %s75 = int_to_ptr.vmem [resolvable:$true] %s74
      %77 = dma.vmem_to_hbm [thread:$0]  %s75, 256, %s3, [#allocation4]
    $region25: #{tpu_custom_call.1} parent=1 // pred_fallthru
      _
    // Predicated region
    $region26: #{tpu_custom_call.1} parent=1 // pred_check
      _
    $region27: #{tpu_custom_call.1} parent=1 // pred_check_branch
      %79 = sbr.rel (0) target = $region29
    $region28: #{tpu_custom_call.1} parent=1 // pred_region
      %80 = dma.done [#allocation4], 256
    $region29: #{tpu_custom_call.1} parent=1 // pred_fallthru
      _
    %81 = vsyncpa [#allocation3], 1
    %82 = vsyncpa [#allocation6], 1
    %83 = vsyncpa [#allocation4], 1

</llo_original>
